<compile_context>
chip_gen: v7x
topology: tpu7x:2x2x1
jax: 0.10.0
libtpu: 0.0.40
codegen_flags: <defaults>
</compile_context>

<pallas_src>
import math

import jax
import jax.numpy as jnp
from jax.experimental import pallas as pl
from jax.experimental.pallas import tpu as pltpu


_LANE = 1024                          # lane-dense last dim (multiple of 128)
_TARGET_TILE_BYTES = 4 * 1024 * 1024  # ~4 MiB per grid step (safe on v7x too)


def _relu_kernel(x_ref, o_ref):
    # Pure VPU elementwise work on the whole VMEM tile.
    o_ref[...] = jnp.maximum(x_ref[...], jnp.zeros((), dtype=x_ref.dtype))


@jax.jit
def relu_pallas(x):
    """F.relu(x) for an arbitrary-shape tensor via a tiled Pallas TPU kernel."""
    orig_shape = x.shape
    dtype = x.dtype
    total = math.prod(orig_shape)
    itemsize = jnp.dtype(dtype).itemsize

    # Rows needed to cover the data at lane width _LANE.
    rows = -(-total // _LANE)

    # ~4 MiB per tile, rounded to a multiple of 8 rows; don't over-allocate
    # for tiny inputs.
    block_rows = max(8, (_TARGET_TILE_BYTES // (_LANE * itemsize)) // 8 * 8)
    rows_min = -(-rows // 8) * 8
    block_rows = min(block_rows, rows_min)

    rows_padded = -(-rows // block_rows) * block_rows
    padded_total = rows_padded * _LANE

    x_flat = x.reshape(-1)
    if padded_total != total:
        x_flat = jnp.pad(x_flat, (0, padded_total - total))
    x2d = x_flat.reshape(rows_padded, _LANE)

    grid = (rows_padded // block_rows,)

    out2d = pl.pallas_call(
        _relu_kernel,
        out_shape=jax.ShapeDtypeStruct((rows_padded, _LANE), dtype),
        grid_spec=pl.GridSpec(
            grid=grid,
            in_specs=[pl.BlockSpec((block_rows, _LANE), lambda i: (i, 0))],
            out_specs=pl.BlockSpec((block_rows, _LANE), lambda i: (i, 0)),
        ),
        compiler_params=pltpu.CompilerParams(
            dimension_semantics=("parallel",),
            vmem_limit_bytes=48 * 1024 * 1024,
        ),
        input_output_aliases={0: 0},
    )(x2d)

    return out2d.reshape(-1)[:total].reshape(orig_shape)


if __name__ == "__main__":
    key = jax.random.PRNGKey(0)
    # Small NCHW input consistent with the module's forward.
    x = jax.random.normal(key, (2, 4, 16, 16), dtype=jnp.float32)

    y = relu_pallas(x)
    jax.block_until_ready(y)

    # Sanity check against the pure-JAX reference.
    y_ref = jnp.maximum(x, 0.0)
    assert y.shape == x.shape and y.dtype == x.dtype
    assert bool(jnp.allclose(y, y_ref)), "mismatch vs reference relu"

    print("KERNEL_OK")
</pallas_src>

<mosaic_0001>
module attributes {stable_mosaic.version = 11 : i64} {
  func.func @_relu_kernel(%arg0: i32, %arg1: memref<8x1024xf32, #tpu.memory_space<vmem>>, %arg2: memref<8x1024xf32, #tpu.memory_space<vmem>>) attributes {dimension_semantics = [#tpu.dimension_semantics<parallel>], iteration_bounds = array<i64: 1>, scalar_prefetch = 0 : i64, scratch_operands = 0 : i64, tpu.core_type = #tpu.core_type<tc>, window_params = [{transform_indices = @transform_0, window_bounds = array<i64: 8, 1024>}, {transform_indices = @transform_1, window_bounds = array<i64: 8, 1024>}]} {
    %c0 = arith.constant 0 : index
    %c0_0 = arith.constant 0 : index
    %0 = vector.load %arg1[%c0, %c0_0] : memref<8x1024xf32, #tpu.memory_space<vmem>>, vector<8x1024xf32>
    %cst = arith.constant 0.000000e+00 : f32
    %1 = vector.broadcast %cst : f32 to vector<8x1024xf32>
    %2 = arith.maximumf %0, %1 : vector<8x1024xf32>
    %c0_1 = arith.constant 0 : index
    %c0_2 = arith.constant 0 : index
    %3 = vector.load %arg2[%c0_1, %c0_2] : memref<8x1024xf32, #tpu.memory_space<vmem>>, vector<8x1024xf32>
    tpu.vector_store %arg2[%c0_1, %c0_2], %2 {strides = array<i32>} : memref<8x1024xf32, #tpu.memory_space<vmem>>, vector<8x1024xf32>,
    return
  }
  func.func @transform_0(%arg0: i32) -> (i32, i32) {
    %c0_i32 = arith.constant 0 : i32
    %c0_i32_0 = arith.constant 0 : i32
    return %arg0, %c0_i32 : i32, i32
  }
  func.func @transform_1(%arg0: i32) -> (i32, i32) {
    %c0_i32 = arith.constant 0 : i32
    %c0_i32_0 = arith.constant 0 : i32
    return %arg0, %c0_i32 : i32, i32
  }
}

</mosaic_0001>

<llo_original>
// kernel: relu_pallas.1
$region0: #{relu_pallas.1}
  #allocation0 [shape = 'u32[]', space=smem, size = 0x4, offset = 0x4, fixed_abs, tag = 'smem constant byte address 0x4 - core index']
  #allocation1 [shape = 'u32[144,128]{1,0:T(1,128)}', space=vmem, size = 0x12000, scoped, tag = 'internal scratch']
  %s0 = inlined_call_operand.vmem [shape: f32[8,1024], index: 0, kind: input, shape index: {}, may-alias: {0,1}]
  %s1 = inlined_call_operand.vmem [shape: f32[8,1024], index: 1, kind: output, shape index: {}, may-alias: {0,1}]
  %s2 = sld [smem:[#allocation0]]
  $region14: #{relu_pallas.1} parent=0
    _
  %s4 = ssub.s32 1, %s2
  %s5 = scalar_select 0, %s4, %s2
  // Predicated region
  $region2: #{relu_pallas.1} parent=0 // pred_check
    _
  $region3: #{relu_pallas.1} parent=0 // pred_check_branch
    %7 = sbr.rel (0) target = $region5
  $region4: #{relu_pallas.1} parent=0 // pred_region
    _
  $region5: #{relu_pallas.1} parent=0 // pred_fallthru
    _
  %v8 = vld [vmem:[%s0] sm:$0xff]
  %v9 = vld [vmem:[%s0 + $0x8] sm:$0xff]
  %v10 = vld [vmem:[%s0 + $0x10] sm:$0xff]
  %v11 = vld [vmem:[%s0 + $0x18] sm:$0xff]
  %v12 = vld [vmem:[%s0 + $0x20] sm:$0xff]
  %v13 = vld [vmem:[%s0 + $0x28] sm:$0xff]
  %v14 = vld [vmem:[%s0 + $0x30] sm:$0xff]
  %v15 = vld [vmem:[%s0 + $0x38] sm:$0xff]
  %v16 = vmax.f32 %v8, 0.0
  %v17 = vmax.f32 %v9, 0.0
  %v18 = vmax.f32 %v10, 0.0
  %v19 = vmax.f32 %v11, 0.0
  %v20 = vmax.f32 %v12, 0.0
  %v21 = vmax.f32 %v13, 0.0
  %v22 = vmax.f32 %v14, 0.0
  %v23 = vmax.f32 %v15, 0.0
  %24 = vst [vmem:[%s1] sm:$0xff] %v16
  %25 = vst [vmem:[%s1 + $0x8] sm:$0xff] %v17
  %26 = vst [vmem:[%s1 + $0x10] sm:$0xff] %v18
  %27 = vst [vmem:[%s1 + $0x18] sm:$0xff] %v19
  %28 = vst [vmem:[%s1 + $0x20] sm:$0xff] %v20
  %29 = vst [vmem:[%s1 + $0x28] sm:$0xff] %v21
  %30 = vst [vmem:[%s1 + $0x30] sm:$0xff] %v22
  %31 = vst [vmem:[%s1 + $0x38] sm:$0xff] %v23
  // Predicated region
  $region6: #{relu_pallas.1} parent=0 // pred_check
    _
  $region7: #{relu_pallas.1} parent=0 // pred_check_branch
    %33 = sbr.rel (0) target = $region9
  $region8: #{relu_pallas.1} parent=0 // pred_region
    _
  $region9: #{relu_pallas.1} parent=0 // pred_fallthru
    _
  // Predicated region
  $region10: #{relu_pallas.1} parent=0 // pred_check
    _
  $region11: #{relu_pallas.1} parent=0 // pred_check_branch
    %35 = sbr.rel (0) target = $region13
  $region12: #{relu_pallas.1} parent=0 // pred_region
    _
  $region13: #{relu_pallas.1} parent=0 // pred_fallthru
    _

</llo_original>
